<compile_context>
chip_gen: v7x
topology: tpu7x:2x2x1
jax: 0.10.0
libtpu: 0.0.40
codegen_flags: <defaults>
</compile_context>

<pallas_src>
import jax
import jax.numpy as jnp
from jax.experimental import pallas as pl
from jax.experimental.pallas import tpu as pltpu


def _round_up(x, m):
    return ((x + m - 1) // m) * m


def _spectral_sigma(w, n_iters=30, seed=0):
    """Largest singular value of w (out, in) via power iteration, in f32.

    Mirrors torch.nn.utils.spectral_norm's sigma (PyTorch amortizes one
    iteration per forward; here we run enough iterations once at prepare
    time).  Random (but deterministic) u init is more robust than ones-init.
    """
    w = w.astype(jnp.float32)
    out_dim, _ = w.shape
    u = jax.random.normal(jax.random.PRNGKey(seed), (out_dim,), dtype=jnp.float32)
    u = u / (jnp.linalg.norm(u) + 1e-12)

    def body(_, u):
        v = w.T @ u
        v = v / (jnp.linalg.norm(v) + 1e-12)
        u = w @ v
        u = u / (jnp.linalg.norm(u) + 1e-12)
        return u

    u = jax.lax.fori_loop(0, n_iters, body, u)
    v = w.T @ u
    v = v / (jnp.linalg.norm(v) + 1e-12)
    return u @ (w @ v)


def _snactor_kernel(scales_ref, x_ref, w1_ref, w2_ref, w3_ref, mu_ref):
    # scales_ref: SMEM f32[2] = [delta / sigma1, delta / sigma2]
    s1 = scales_ref[0]
    s2 = scales_ref[1]

    # fc1 (spectral norm folded into s1), tanh in f32.
    h = jnp.dot(x_ref[...], w1_ref[...], preferred_element_type=jnp.float32)
    h = jnp.tanh(h * s1)

    # fc2 (spectral norm folded into s2), tanh in f32.
    h = jnp.dot(h.astype(w2_ref.dtype), w2_ref[...],
                preferred_element_type=jnp.float32)
    h = jnp.tanh(h * s2)

    # fc3 -> mu (output dim lane-padded to a multiple of 128 => dense store).
    mu = jnp.dot(h.astype(w3_ref.dtype), w3_ref[...],
                 preferred_element_type=jnp.float32)
    mu_ref[...] = mu.astype(mu_ref.dtype)


def snactor_prepare(w1, w2, w3, delta=1.0, *, compute_dtype=jnp.bfloat16):
    """One-time parameter setup (do NOT re-run per forward).

    w1/w2/w3 are PyTorch-layout (out, in) Linear weights.  Returns transposed
    (in, out) compute-dtype weights, a lane-padded w3, and the per-layer
    scales (delta / sigma) to be applied inside the kernel.
    """
    sigma1 = _spectral_sigma(w1)
    sigma2 = _spectral_sigma(w2)
    scales = jnp.stack([delta / sigma1, delta / sigma2]).astype(jnp.float32)

    dim_action = w3.shape[0]
    a_pad = _round_up(dim_action, 128)
    w3t = jnp.pad(w3.T, ((0, 0), (0, a_pad - dim_action)))  # (units1, a_pad)

    return {
        "w1t": w1.T.astype(compute_dtype),   # (dim_state, units0)
        "w2t": w2.T.astype(compute_dtype),   # (units0, units1)
        "w3t": w3t.astype(compute_dtype),    # (units1, a_pad)
        "scales": scales,                    # (2,) f32
        "dim_action": dim_action,
    }


def snactor_apply(x, params, *, block_b=None):
    """Hot path.  x: (B, dim_state).  Returns (mu, std), each (B, dim_action)."""
    w1t, w2t, w3t = params["w1t"], params["w2t"], params["w3t"]
    scales = params["scales"]
    dim_action = params["dim_action"]

    B, dim_state = x.shape
    a_pad = w3t.shape[1]

    # Batch tile: full batch if small; otherwise 1024-row tiles (multiple of 8)
    # sized to comfortably fit v7x's smaller VMEM while enabling pipelining.
    if block_b is None:
        block_b = B if B <= 1024 else 1024
    block_b = min(block_b, B)

    xc = x.astype(w1t.dtype)

    mu_pad = pl.pallas_call(
        _snactor_kernel,
        out_shape=jax.ShapeDtypeStruct((B, a_pad), x.dtype),
        grid=(pl.cdiv(B, block_b),),
        in_specs=[
            pl.BlockSpec(memory_space=pltpu.MemorySpace.SMEM),       # scales
            pl.BlockSpec((block_b, dim_state), lambda i: (i, 0)),    # x tile
            pl.BlockSpec(w1t.shape, lambda i: (0, 0)),               # resident
            pl.BlockSpec(w2t.shape, lambda i: (0, 0)),               # resident
            pl.BlockSpec(w3t.shape, lambda i: (0, 0)),               # resident
        ],
        out_specs=pl.BlockSpec((block_b, a_pad), lambda i: (i, 0)),
        compiler_params=pltpu.CompilerParams(
            dimension_semantics=("parallel",),
        ),
    )(scales, xc, w1t, w2t, w3t)

    mu = mu_pad[:, :dim_action]
    std = jnp.ones_like(mu)  # constant: built in the wrapper, not stored by the kernel
    return mu, std


def snactor_forward(x, w1, w2, w3, delta=1.0, *,
                    compute_dtype=jnp.bfloat16, block_b=None):
    """Convenience wrapper; in real use cache snactor_prepare's output."""
    params = snactor_prepare(w1, w2, w3, delta, compute_dtype=compute_dtype)
    return snactor_apply(x, params, block_b=block_b)


def _reference_forward(x, w1, w2, w3, delta=1.0):
    """Pure-JAX f32 reference mirroring the PyTorch forward."""
    s1 = _spectral_sigma(w1)
    s2 = _spectral_sigma(w2)
    h = jnp.tanh((x @ w1.T) * (delta / s1))
    h = jnp.tanh((h @ w2.T) * (delta / s2))
    mu = h @ w3.T
    return mu, jnp.ones_like(mu)


if __name__ == "__main__":
    # Small shapes consistent with the module: dim_state=16, units=(32,32),
    # dim_action=4, batch=8, bias=False, norm_scale=1.0.
    key = jax.random.PRNGKey(0)
    kx, k1, k2, k3 = jax.random.split(key, 4)

    B, dim_state, dim_action = 8, 16, 4
    units = (32, 32)
    delta = 1.0

    x = jax.random.normal(kx, (B, dim_state), dtype=jnp.float32)
    w1 = jax.random.uniform(k1, (units[0], dim_state), jnp.float32, -0.25, 0.25)
    w2 = jax.random.uniform(k2, (units[1], units[0]), jnp.float32, -0.18, 0.18)
    w3 = jax.random.uniform(k3, (dim_action, units[1]), jnp.float32, -0.18, 0.18)

    mu_ref, std_ref = _reference_forward(x, w1, w2, w3, delta)

    # f32-operand path: tight correctness check.
    mu32, std32 = snactor_forward(x, w1, w2, w3, delta, compute_dtype=jnp.float32)
    jax.block_until_ready((mu32, std32))
    assert mu32.shape == (B, dim_action) and std32.shape == (B, dim_action)
    assert jnp.allclose(mu32, mu_ref, atol=1e-4, rtol=1e-4), "mu (f32) mismatch"
    assert jnp.allclose(std32, std_ref), "std (f32) mismatch"

    # Default bf16-operand path (f32 accumulation): relaxed tolerance.
    mu_bf, std_bf = snactor_forward(x, w1, w2, w3, delta)
    jax.block_until_ready((mu_bf, std_bf))
    assert mu_bf.shape == (B, dim_action) and std_bf.shape == (B, dim_action)
    assert jnp.allclose(mu_bf, mu_ref, atol=5e-2, rtol=5e-2), "mu (bf16) mismatch"
    assert jnp.allclose(std_bf, std_ref), "std (bf16) mismatch"

    print("KERNEL_OK")
</pallas_src>

<mosaic_0001>
module attributes {stable_mosaic.version = 11 : i64} {
  func.func @_snactor_kernel(%arg0: i32, %arg1: memref<2xf32, #tpu.memory_space<smem>>, %arg2: memref<8x16xf32, #tpu.memory_space<vmem>>, %arg3: memref<16x32xf32, #tpu.memory_space<vmem>>, %arg4: memref<32x32xf32, #tpu.memory_space<vmem>>, %arg5: memref<32x128xf32, #tpu.memory_space<vmem>>, %arg6: memref<8x128xf32, #tpu.memory_space<vmem>>) attributes {dimension_semantics = [#tpu.dimension_semantics<parallel>], iteration_bounds = array<i64: 1>, scalar_prefetch = 0 : i64, scratch_operands = 0 : i64, tpu.core_type = #tpu.core_type<tc>, window_params = [{transform_indices = @transform_0, window_bounds = array<i64: 2>}, {transform_indices = @transform_1, window_bounds = array<i64: 8, 16>}, {pipeline_mode = #tpu.pipeline_mode<synchronous>, transform_indices = @transform_2, window_bounds = array<i64: 16, 32>}, {pipeline_mode = #tpu.pipeline_mode<synchronous>, transform_indices = @transform_3, window_bounds = array<i64: 32, 32>}, {pipeline_mode = #tpu.pipeline_mode<synchronous>, transform_indices = @transform_4, window_bounds = array<i64: 32, 128>}, {transform_indices = @transform_5, window_bounds = array<i64: 8, 128>}]} {
    %c0 = arith.constant 0 : index
    %0 = memref.load %arg1[%c0] : memref<2xf32, #tpu.memory_space<smem>>
    %c1 = arith.constant 1 : index
    %1 = memref.load %arg1[%c1] : memref<2xf32, #tpu.memory_space<smem>>
    %c0_0 = arith.constant 0 : index
    %c0_1 = arith.constant 0 : index
    %2 = vector.load %arg2[%c0_0, %c0_1] : memref<8x16xf32, #tpu.memory_space<vmem>>, vector<8x16xf32>
    %c0_2 = arith.constant 0 : index
    %c0_3 = arith.constant 0 : index
    %3 = vector.load %arg3[%c0_2, %c0_3] : memref<16x32xf32, #tpu.memory_space<vmem>>, vector<16x32xf32>
    %cst = arith.constant dense<0.000000e+00> : vector<8x32xf32>
    %4 = tpu.matmul %2, %3, %cst {dimension_numbers = #tpu.dot_dimension_numbers<[1], [0], [0], [1], [0, 0, 1, 1], [], []>} : vector<8x16xf32>, vector<16x32xf32>, vector<8x32xf32> -> vector<8x32xf32>
    %5 = vector.broadcast %0 : f32 to vector<8x32xf32>
    %6 = arith.mulf %4, %5 : vector<8x32xf32>
    %7 = math.tanh %6 : vector<8x32xf32>
    %c0_4 = arith.constant 0 : index
    %c0_5 = arith.constant 0 : index
    %8 = vector.load %arg4[%c0_4, %c0_5] : memref<32x32xf32, #tpu.memory_space<vmem>>, vector<32x32xf32>
    %cst_6 = arith.constant dense<0.000000e+00> : vector<8x32xf32>
    %9 = tpu.matmul %7, %8, %cst_6 {dimension_numbers = #tpu.dot_dimension_numbers<[1], [0], [0], [1], [0, 0, 1, 1], [], []>} : vector<8x32xf32>, vector<32x32xf32>, vector<8x32xf32> -> vector<8x32xf32>
    %10 = vector.broadcast %1 : f32 to vector<8x32xf32>
    %11 = arith.mulf %9, %10 : vector<8x32xf32>
    %12 = math.tanh %11 : vector<8x32xf32>
    %c0_7 = arith.constant 0 : index
    %c0_8 = arith.constant 0 : index
    %13 = vector.load %arg5[%c0_7, %c0_8] : memref<32x128xf32, #tpu.memory_space<vmem>>, vector<32x128xf32>
    %cst_9 = arith.constant dense<0.000000e+00> : vector<8x128xf32>
    %14 = tpu.matmul %12, %13, %cst_9 {dimension_numbers = #tpu.dot_dimension_numbers<[1], [0], [0], [1], [0, 0, 1, 1], [], []>} : vector<8x32xf32>, vector<32x128xf32>, vector<8x128xf32> -> vector<8x128xf32>
    %c0_10 = arith.constant 0 : index
    %c0_11 = arith.constant 0 : index
    %15 = vector.load %arg6[%c0_10, %c0_11] : memref<8x128xf32, #tpu.memory_space<vmem>>, vector<8x128xf32>
    tpu.vector_store %arg6[%c0_10, %c0_11], %14 {strides = array<i32>} : memref<8x128xf32, #tpu.memory_space<vmem>>, vector<8x128xf32>,
    return
  }
  func.func @transform_0(%arg0: i32) -> i32 {
    %c0_i32 = arith.constant 0 : i32
    %c0_i32_0 = arith.constant 0 : i32
    return %c0_i32 : i32
  }
  func.func @transform_1(%arg0: i32) -> (i32, i32) {
    %c0_i32 = arith.constant 0 : i32
    %c0_i32_0 = arith.constant 0 : i32
    return %arg0, %c0_i32 : i32, i32
  }
  func.func @transform_2(%arg0: i32) -> (i32, i32) {
    %c0_i32 = arith.constant 0 : i32
    %c0_i32_0 = arith.constant 0 : i32
    %c0_i32_1 = arith.constant 0 : i32
    return %c0_i32, %c0_i32_0 : i32, i32
  }
  func.func @transform_3(%arg0: i32) -> (i32, i32) {
    %c0_i32 = arith.constant 0 : i32
    %c0_i32_0 = arith.constant 0 : i32
    %c0_i32_1 = arith.constant 0 : i32
    return %c0_i32, %c0_i32_0 : i32, i32
  }
  func.func @transform_4(%arg0: i32) -> (i32, i32) {
    %c0_i32 = arith.constant 0 : i32
    %c0_i32_0 = arith.constant 0 : i32
    %c0_i32_1 = arith.constant 0 : i32
    return %c0_i32, %c0_i32_0 : i32, i32
  }
  func.func @transform_5(%arg0: i32) -> (i32, i32) {
    %c0_i32 = arith.constant 0 : i32
    %c0_i32_0 = arith.constant 0 : i32
    return %arg0, %c0_i32 : i32, i32
  }
}

</mosaic_0001>

<llo_original>
// kernel: tpu_custom_call.1
$region0: #{tpu_custom_call.1}
  #allocation0 [shape = 'u32[]', space=smem, size = 0x4, offset = 0x4, fixed_abs, tag = 'smem constant byte address 0x4 - core index']
  #allocation1 [shape = 'u32[144,128]{1,0:T(1,128)}', space=vmem, size = 0x12000, scoped, tag = 'internal scratch']
  %s0 = inlined_call_operand.hbm [shape: f32[2], index: 0, kind: input, shape index: {}]
  %s1 = inlined_call_operand.hbm [shape: f32[8,16], index: 1, kind: input, shape index: {}]
  %s2 = inlined_call_operand.hbm [shape: f32[16,32], index: 2, kind: input, shape index: {}]
  %s3 = inlined_call_operand.hbm [shape: f32[32,32], index: 3, kind: input, shape index: {}]
  %s4 = inlined_call_operand.hbm [shape: f32[32,128], index: 4, kind: input, shape index: {}]
  %s5 = inlined_call_operand.hbm [shape: f32[8,128], index: 5, kind: output, shape index: {}]
  %s6 = sld [smem:[#allocation0]]
  $region50: #{tpu_custom_call.1} parent=0
    _
  %s8 = ssub.s32 1, %s6
  %s9 = scalar_select 0, %s8, %s6
  $region1: #{tpu_custom_call.1} parent=0
    #allocation2 [shape = 'u8[512]{0}', space=smem, size = 0x200, scoped, tag = 'input window, operand 0, single buffered']
    #allocation3 [shape = 's32[1]{0}', space=sflag, size = 0x4, scoped, tag = 'scoped memory for tpu_custom_call.1']
    #allocation4 [shape = 's32[1]{0}', space=sflag, size = 0x4, scoped, tag = 'scoped memory for tpu_custom_call.1']
    #allocation5 [shape = 's32[1]{0}', space=sflag, size = 0x4, scoped, tag = 'scoped memory for tpu_custom_call.1']
    #allocation6 [shape = 'u8[4096]{0}', space=vmem, size = 0x1000, scoped, tag = 'input window, operand 1, single buffered']
    #allocation7 [shape = 'u8[8192]{0}', space=vmem, size = 0x2000, scoped, tag = 'input window, operand 2, single buffered']
    #allocation8 [shape = 's32[1]{0}', space=sflag, size = 0x4, scoped, tag = 'scoped memory for tpu_custom_call.1']
    #allocation9 [shape = 'u8[16384]{0}', space=vmem, size = 0x4000, scoped, tag = 'input window, operand 3, single buffered']
    #allocation10 [shape = 'u8[16384]{0}', space=vmem, size = 0x4000, scoped, tag = 'input window, operand 4, single buffered']
    #allocation11 [shape = 's32[1]{0}', space=sflag, size = 0x4, scoped, tag = 'scoped memory for tpu_custom_call.1']
    #allocation12 [shape = 'u8[4096]{0}', space=vmem, size = 0x1000, scoped, tag = 'output window, operand 0, single buffered']
    %10 = vsyncpa [#allocation5], 0
    %11 = vsyncpa [#allocation3], 0
    %12 = vsyncpa [#allocation8], 0
    %13 = vsyncpa [#allocation11], 0
    %14 = vsyncpa [#allocation4], 0
    // Predicated region
    $region2: #{tpu_custom_call.1} parent=1 // pred_check
      _
    $region3: #{tpu_custom_call.1} parent=1 // pred_check_branch
      %16 = sbr.rel (0) target = $region5
    $region4: #{tpu_custom_call.1} parent=1 // pred_region
      %s18 = ssub.s32 16, 16
      %19 = vsyncadd [#allocation5], %s18
      %22 = dma.hbm_to_smem %s0, 16, [#allocation2], [#allocation5]
    $region5: #{tpu_custom_call.1} parent=1 // pred_fallthru
      _
    // Predicated region
    $region6: #{tpu_custom_call.1} parent=1 // pred_check
      _
    $region7: #{tpu_custom_call.1} parent=1 // pred_check_branch
      %24 = sbr.rel (0) target = $region9
    $region8: #{tpu_custom_call.1} parent=1 // pred_region
      %s26 = ssub.s32 128, 128
      %27 = vsyncadd [#allocation3], %s26
      %s29 = sshll.u32 [#allocation6], 4
      %s30 = int_to_ptr.vmem [resolvable:$true] %s29
      %32 = dma.hbm_to_vmem [thread:$0]  %s1, 128, %s30, [#allocation3]
    $region9: #{tpu_custom_call.1} parent=1 // pred_fallthru
      _
    // Predicated region
    $region10: #{tpu_custom_call.1} parent=1 // pred_check
      _
    $region11: #{tpu_custom_call.1} parent=1 // pred_check_branch
      %34 = sbr.rel (0) target = $region13
    $region12: #{tpu_custom_call.1} parent=1 // pred_region
      %s36 = ssub.s32 256, 256
      %37 = vsyncadd [#allocation8], %s36
      %s38 = sshll.u32 [#allocation7], 4
      %s39 = int_to_ptr.vmem [resolvable:$true] %s38
      %44 = dma.hbm_to_vmem [thread:$0]  %s2, 256, %s39, [#allocation8], 128, 128, 8
    $region13: #{tpu_custom_call.1} parent=1 // pred_fallthru
      _
    // Predicated region
    $region14: #{tpu_custom_call.1} parent=1 // pred_check
      _
    $region15: #{tpu_custom_call.1} parent=1 // pred_check_branch
      %46 = sbr.rel (0) target = $region17
    $region16: #{tpu_custom_call.1} parent=1 // pred_region
      %s48 = ssub.s32 512, 512
      %49 = vsyncadd [#allocation8], %s48
      %s50 = sshll.u32 [#allocation9], 4
      %s51 = int_to_ptr.vmem [resolvable:$true] %s50
      %56 = dma.hbm_to_vmem [thread:$0]  %s3, 512, %s51, [#allocation8], 128, 128, 8
    $region17: #{tpu_custom_call.1} parent=1 // pred_fallthru
      _
    // Predicated region
    $region18: #{tpu_custom_call.1} parent=1 // pred_check
      _
    $region19: #{tpu_custom_call.1} parent=1 // pred_check_branch
      %58 = sbr.rel (0) target = $region21
    $region20: #{tpu_custom_call.1} parent=1 // pred_region
      %s60 = ssub.s32 512, 512
      %61 = vsyncadd [#allocation11], %s60
      %s62 = sshll.u32 [#allocation10], 4
      %s63 = int_to_ptr.vmem [resolvable:$true] %s62
      %68 = dma.hbm_to_vmem [thread:$0]  %s4, 512, %s63, [#allocation11], 128, 128, 8
    $region21: #{tpu_custom_call.1} parent=1 // pred_fallthru
      _
    // Predicated region
    $region22: #{tpu_custom_call.1} parent=1 // pred_check
      _
    $region23: #{tpu_custom_call.1} parent=1 // pred_check_branch
      %70 = sbr.rel (0) target = $region25
    $region24: #{tpu_custom_call.1} parent=1 // pred_region
      %71 = dma.done [#allocation5], 16
    $region25: #{tpu_custom_call.1} parent=1 // pred_fallthru
      _
    // Predicated region
    $region26: #{tpu_custom_call.1} parent=1 // pred_check
      _
    $region27: #{tpu_custom_call.1} parent=1 // pred_check_branch
      %73 = sbr.rel (0) target = $region29
    $region28: #{tpu_custom_call.1} parent=1 // pred_region
      %74 = dma.done [#allocation3], 128
    $region29: #{tpu_custom_call.1} parent=1 // pred_fallthru
      _
    // Predicated region
    $region30: #{tpu_custom_call.1} parent=1 // pred_check
      _
    $region31: #{tpu_custom_call.1} parent=1 // pred_check_branch
      %76 = sbr.rel (0) target = $region33
    $region32: #{tpu_custom_call.1} parent=1 // pred_region
      %77 = dma.done [#allocation8], 256
    $region33: #{tpu_custom_call.1} parent=1 // pred_fallthru
      _
    // Predicated region
    $region34: #{tpu_custom_call.1} parent=1 // pred_check
      _
    $region35: #{tpu_custom_call.1} parent=1 // pred_check_branch
      %79 = sbr.rel (0) target = $region37
    $region36: #{tpu_custom_call.1} parent=1 // pred_region
      %80 = dma.done [#allocation8], 512
    $region37: #{tpu_custom_call.1} parent=1 // pred_fallthru
      _
    // Predicated region
    $region38: #{tpu_custom_call.1} parent=1 // pred_check
      _
    $region39: #{tpu_custom_call.1} parent=1 // pred_check_branch
      %82 = sbr.rel (0) target = $region41
    $region40: #{tpu_custom_call.1} parent=1 // pred_region
      %83 = dma.done [#allocation11], 512
    $region41: #{tpu_custom_call.1} parent=1 // pred_fallthru
      _
    %84 = sfence
    %s85 = sld [smem:[#allocation2]]
    %s86 = sld [smem:[#allocation2 + $0x1]]
    %v87 = vld [vmem:[#allocation6] sm:$0xff]
    %v88 = vld [vmem:[#allocation7] sm:$0xff]
    %v89 = vld [vmem:[#allocation7 + $0x8] sm:$0xff]
    %vm90 = vcmask 130048
    %v92 = vsel %vm90, %v87, 0
    %94 = vmatprep.subr.mxu0 0.0
    %95 = vmatpush1.msra.mxu0 %v88
    %96 = vmatprep.subr.mxu0 0.0
    %97 = vmatpush1.msra.mxu0 %v89
    %98 = vmatprep.subr.mxu0 0.0
    %99 = vmatpush1.msra.mxu0 0.0
    %100 = vmatprep.subr.mxu0 0.0
    %101 = vmatpush1.msra.mxu0 0.0
    %102 = vmatprep.subr.mxu0 0.0
    %103 = vmatpush1.msra.mxu0 0.0
    %104 = vmatprep.subr.mxu0 0.0
    %105 = vmatpush1.msra.mxu0 0.0
    %106 = vmatprep.subr.mxu0 0.0
    %107 = vmatpush1.msra.mxu0 0.0
    %108 = vmatprep.subr.mxu0 0.0
    %109 = vmatpush1.msra.mxu0 0.0
    %110 = vmatprep.subr.mxu0 0.0
    %111 = vmatpush1.msra.mxu0 0.0
    %112 = vmatprep.subr.mxu0 0.0
    %113 = vmatpush1.msra.mxu0 0.0
    %114 = vmatprep.subr.mxu0 0.0
    %115 = vmatpush1.msra.mxu0 0.0
    %116 = vmatprep.subr.mxu0 0.0
    %117 = vmatpush1.msra.mxu0 0.0
    %118 = vmatprep.subr.mxu0 0.0
    %119 = vmatpush1.msra.mxu0 0.0
    %120 = vmatprep.subr.mxu0 0.0
    %121 = vmatpush1.msra.mxu0 0.0
    %122 = vmatprep.subr.mxu0 0.0
    %123 = vmatpush1.msra.mxu0 0.0
    %124 = vmatprep.subr.mxu0 0.0
    %125 = vmatpush1.msra.mxu0 0.0
    %126 = vmatprep.subr.mxu0 0.0
    %127 = vmatpush1.msra.mxu0 0.0
    %128 = vmatprep.subr.mxu0 0.0
    %129 = vmatpush1.msra.mxu0 0.0
    %130 = vmatprep.subr.mxu0 0.0
    %131 = vmatpush1.msra.mxu0 0.0
    %132 = vmatprep.subr.mxu0 0.0
    %133 = vmatpush1.msra.mxu0 0.0
    %134 = vmatprep.subr.mxu0 0.0
    %135 = vmatpush1.msra.mxu0 0.0
    %136 = vmatprep.subr.mxu0 0.0
    %137 = vmatpush1.msra.mxu0 0.0
    %138 = vmatprep.subr.mxu0 0.0
    %139 = vmatpush1.msra.mxu0 0.0
    %140 = vmatprep.subr.mxu0 0.0
    %141 = vmatpush1.msra.mxu0 0.0
    %142 = vmatprep.subr.mxu0 0.0
    %143 = vmatpush1.msra.mxu0 0.0
    %144 = vmatprep.subr.mxu0 0.0
    %145 = vmatpush1.msra.mxu0 0.0
    %146 = vmatprep.subr.mxu0 0.0
    %147 = vmatpush1.msra.mxu0 0.0
    %148 = vmatprep.subr.mxu0 0.0
    %149 = vmatpush1.msra.mxu0 0.0
    %150 = vmatprep.subr.mxu0 0.0
    %151 = vmatpush1.msra.mxu0 0.0
    %152 = vmatprep.subr.mxu0 0.0
    %153 = vmatpush1.msra.mxu0 0.0
    %154 = vmatprep.subr.mxu0 0.0
    %155 = vmatpush1.msra.mxu0 0.0
    %156 = vmatprep.subr.mxu0 0.0
    %157 = vmatpush1.msra.mxu0 0.0
    %158 = vmatprep.mubr.f32.mxu0 0.0
    %159 = vmatmul.mubr.f32.gmra.mrb[0].mxu0 %v92
    %v160 = vpop.f32.mrb[0].mxu0
    %v161 = vadd.f32 0.0, %v160
    %v162 = vpop.f32.mrb[0].mxu0
    %163 = vdwg.mxu0
    %v164 = vstv %s85
    %v165 = vmul.f32 %v161, %v164
    %v166 = vtanh.pop %v165
    %v167 = vld [vmem:[#allocation9] sm:$0xff]
    %v168 = vld [vmem:[#allocation9 + $0x8] sm:$0xff]
    %v169 = vld [vmem:[#allocation9 + $0x10] sm:$0xff]
    %v170 = vld [vmem:[#allocation9 + $0x18] sm:$0xff]
    %vm171 = vcmask 261120
    %v173 = vsel %vm171, %v166, 0
    %175 = vmatprep.subr.mxu0 0.0
    %176 = vmatpush1.msra.mxu0 %v167
    %177 = vmatprep.subr.mxu0 0.0
    %178 = vmatpush1.msra.mxu0 %v168
    %179 = vmatprep.subr.mxu0 0.0
    %180 = vmatpush1.msra.mxu0 %v169
    %181 = vmatprep.subr.mxu0 0.0
    %182 = vmatpush1.msra.mxu0 %v170
    %183 = vmatprep.subr.mxu0 0.0
    %184 = vmatpush1.msra.mxu0 0.0
    %185 = vmatprep.subr.mxu0 0.0
    %186 = vmatpush1.msra.mxu0 0.0
    %187 = vmatprep.subr.mxu0 0.0
    %188 = vmatpush1.msra.mxu0 0.0
    %189 = vmatprep.subr.mxu0 0.0
    %190 = vmatpush1.msra.mxu0 0.0
    %191 = vmatprep.subr.mxu0 0.0
    %192 = vmatpush1.msra.mxu0 0.0
    %193 = vmatprep.subr.mxu0 0.0
    %194 = vmatpush1.msra.mxu0 0.0
    %195 = vmatprep.subr.mxu0 0.0
    %196 = vmatpush1.msra.mxu0 0.0
    %197 = vmatprep.subr.mxu0 0.0
    %198 = vmatpush1.msra.mxu0 0.0
    %199 = vmatprep.subr.mxu0 0.0
    %200 = vmatpush1.msra.mxu0 0.0
    %201 = vmatprep.subr.mxu0 0.0
    %202 = vmatpush1.msra.mxu0 0.0
    %203 = vmatprep.subr.mxu0 0.0
    %204 = vmatpush1.msra.mxu0 0.0
    %205 = vmatprep.subr.mxu0 0.0
    %206 = vmatpush1.msra.mxu0 0.0
    %207 = vmatprep.subr.mxu0 0.0
    %208 = vmatpush1.msra.mxu0 0.0
    %209 = vmatprep.subr.mxu0 0.0
    %210 = vmatpush1.msra.mxu0 0.0
    %211 = vmatprep.subr.mxu0 0.0
    %212 = vmatpush1.msra.mxu0 0.0
    %213 = vmatprep.subr.mxu0 0.0
    %214 = vmatpush1.msra.mxu0 0.0
    %215 = vmatprep.subr.mxu0 0.0
    %216 = vmatpush1.msra.mxu0 0.0
    %217 = vmatprep.subr.mxu0 0.0
    %218 = vmatpush1.msra.mxu0 0.0
    %219 = vmatprep.subr.mxu0 0.0
    %220 = vmatpush1.msra.mxu0 0.0
    %221 = vmatprep.subr.mxu0 0.0
    %222 = vmatpush1.msra.mxu0 0.0
    %223 = vmatprep.subr.mxu0 0.0
    %224 = vmatpush1.msra.mxu0 0.0
    %225 = vmatprep.subr.mxu0 0.0
    %226 = vmatpush1.msra.mxu0 0.0
    %227 = vmatprep.subr.mxu0 0.0
    %228 = vmatpush1.msra.mxu0 0.0
    %229 = vmatprep.subr.mxu0 0.0
    %230 = vmatpush1.msra.mxu0 0.0
    %231 = vmatprep.subr.mxu0 0.0
    %232 = vmatpush1.msra.mxu0 0.0
    %233 = vmatprep.subr.mxu0 0.0
    %234 = vmatpush1.msra.mxu0 0.0
    %235 = vmatprep.subr.mxu0 0.0
    %236 = vmatpush1.msra.mxu0 0.0
    %237 = vmatprep.subr.mxu0 0.0
    %238 = vmatpush1.msra.mxu0 0.0
    %239 = vmatprep.mubr.f32.mxu0 0.0
    %240 = vmatmul.mubr.f32.gmra.mrb[0].mxu0 %v173
    %v241 = vpop.f32.mrb[0].mxu0
    %v242 = vadd.f32 0.0, %v241
    %v243 = vpop.f32.mrb[0].mxu0
    %244 = vdwg.mxu0
    %v245 = vstv %s86
    %v246 = vmul.f32 %v242, %v245
    %v247 = vtanh.pop %v246
    %v248 = vld [vmem:[#allocation10] sm:$0xff]
    %v249 = vld [vmem:[#allocation10 + $0x8] sm:$0xff]
    %v250 = vld [vmem:[#allocation10 + $0x10] sm:$0xff]
    %v251 = vld [vmem:[#allocation10 + $0x18] sm:$0xff]
    %v253 = vsel %vm171, %v247, 0
    %255 = vmatprep.subr.mxu0 0.0
    %256 = vmatpush1.msra.mxu0 %v248
    %257 = vmatprep.subr.mxu0 0.0
    %258 = vmatpush1.msra.mxu0 %v249
    %259 = vmatprep.subr.mxu0 0.0
    %260 = vmatpush1.msra.mxu0 %v250
    %261 = vmatprep.subr.mxu0 0.0
    %262 = vmatpush1.msra.mxu0 %v251
    %263 = vmatprep.subr.mxu0 0.0
    %264 = vmatpush1.msra.mxu0 0.0
    %265 = vmatprep.subr.mxu0 0.0
    %266 = vmatpush1.msra.mxu0 0.0
    %267 = vmatprep.subr.mxu0 0.0
    %268 = vmatpush1.msra.mxu0 0.0
    %269 = vmatprep.subr.mxu0 0.0
    %270 = vmatpush1.msra.mxu0 0.0
    %271 = vmatprep.subr.mxu0 0.0
    %272 = vmatpush1.msra.mxu0 0.0
    %273 = vmatprep.subr.mxu0 0.0
    %274 = vmatpush1.msra.mxu0 0.0
    %275 = vmatprep.subr.mxu0 0.0
    %276 = vmatpush1.msra.mxu0 0.0
    %277 = vmatprep.subr.mxu0 0.0
    %278 = vmatpush1.msra.mxu0 0.0
    %279 = vmatprep.subr.mxu0 0.0
    %280 = vmatpush1.msra.mxu0 0.0
    %281 = vmatprep.subr.mxu0 0.0
    %282 = vmatpush1.msra.mxu0 0.0
    %283 = vmatprep.subr.mxu0 0.0
    %284 = vmatpush1.msra.mxu0 0.0
    %285 = vmatprep.subr.mxu0 0.0
    %286 = vmatpush1.msra.mxu0 0.0
    %287 = vmatprep.subr.mxu0 0.0
    %288 = vmatpush1.msra.mxu0 0.0
    %289 = vmatprep.subr.mxu0 0.0
    %290 = vmatpush1.msra.mxu0 0.0
    %291 = vmatprep.subr.mxu0 0.0
    %292 = vmatpush1.msra.mxu0 0.0
    %293 = vmatprep.subr.mxu0 0.0
    %294 = vmatpush1.msra.mxu0 0.0
    %295 = vmatprep.subr.mxu0 0.0
    %296 = vmatpush1.msra.mxu0 0.0
    %297 = vmatprep.subr.mxu0 0.0
    %298 = vmatpush1.msra.mxu0 0.0
    %299 = vmatprep.subr.mxu0 0.0
    %300 = vmatpush1.msra.mxu0 0.0
    %301 = vmatprep.subr.mxu0 0.0
    %302 = vmatpush1.msra.mxu0 0.0
    %303 = vmatprep.subr.mxu0 0.0
    %304 = vmatpush1.msra.mxu0 0.0
    %305 = vmatprep.subr.mxu0 0.0
    %306 = vmatpush1.msra.mxu0 0.0
    %307 = vmatprep.subr.mxu0 0.0
    %308 = vmatpush1.msra.mxu0 0.0
    %309 = vmatprep.subr.mxu0 0.0
    %310 = vmatpush1.msra.mxu0 0.0
    %311 = vmatprep.subr.mxu0 0.0
    %312 = vmatpush1.msra.mxu0 0.0
    %313 = vmatprep.subr.mxu0 0.0
    %314 = vmatpush1.msra.mxu0 0.0
    %315 = vmatprep.subr.mxu0 0.0
    %316 = vmatpush1.msra.mxu0 0.0
    %317 = vmatprep.subr.mxu0 0.0
    %318 = vmatpush1.msra.mxu0 0.0
    %319 = vmatprep.mubr.f32.mxu0 0.0
    %320 = vmatmul.mubr.f32.gmra.mrb[0].mxu0 %v253
    %v321 = vpop.f32.mrb[0].mxu0
    %v322 = vadd.f32 0.0, %v321
    %v323 = vpop.f32.mrb[0].mxu0
    %324 = vdwg.mxu0
    %325 = vst [vmem:[#allocation12] sm:$0xff] %v322
    // Predicated region
    $region42: #{tpu_custom_call.1} parent=1 // pred_check
      _
    $region43: #{tpu_custom_call.1} parent=1 // pred_check_branch
      %327 = sbr.rel (0) target = $region45
    $region44: #{tpu_custom_call.1} parent=1 // pred_region
      %s329 = ssub.s32 128, 128
      %330 = vsyncadd [#allocation4], %s329
      %s332 = sshll.u32 [#allocation12], 4
      %s333 = int_to_ptr.vmem [resolvable:$true] %s332
      %335 = dma.vmem_to_hbm [thread:$0]  %s333, 128, %s5, [#allocation4]
    $region45: #{tpu_custom_call.1} parent=1 // pred_fallthru
      _
    // Predicated region
    $region46: #{tpu_custom_call.1} parent=1 // pred_check
      _
    $region47: #{tpu_custom_call.1} parent=1 // pred_check_branch
      %337 = sbr.rel (0) target = $region49
    $region48: #{tpu_custom_call.1} parent=1 // pred_region
      %338 = dma.done [#allocation4], 128
    $region49: #{tpu_custom_call.1} parent=1 // pred_fallthru
      _
    %339 = vsyncpa [#allocation3], 1
    %340 = vsyncpa [#allocation8], 1
    %341 = vsyncpa [#allocation11], 1
    %342 = vsyncpa [#allocation4], 1
    %343 = vsyncpa [#allocation5], 1

</llo_original>
